<compile_context>
chip_gen: v5e
topology: v5e:2x2
jax: 0.10.0
libtpu: 0.0.40
codegen_flags: <defaults>
</compile_context>

<pallas_src>
import numpy as np
import jax
import jax.numpy as jnp
from jax import lax
from jax.experimental import pallas as pl
from jax.experimental.pallas import tpu as pltpu


def _fused_cumprod_kernel(s_ref, o_ref):
    """Inclusive running-product scan along axis 0 of the whole (N, M) tile."""
    a = s_ref[...]
    n = a.shape[0]
    row = lax.broadcasted_iota(jnp.int32, a.shape, 0)
    d = 1
    while d < n:                       # static Python loop -> fully unrolled
        shifted = pltpu.roll(a, d, axis=0)          # shifted[i] = a[i - d]
        a = a * jnp.where(row >= d, shifted, jnp.ones_like(a))
        d *= 2
    o_ref[...] = a.astype(o_ref.dtype)


def _scan_slab(slab):
    n, m = slab.shape
    return pl.pallas_call(
        _fused_cumprod_kernel,
        out_shape=jax.ShapeDtypeStruct((n, m), slab.dtype),
        grid=(1,),
        in_specs=[pl.BlockSpec((n, m), lambda i: (0, 0))],
        out_specs=pl.BlockSpec((n, m), lambda i: (0, 0)),
    )(slab)


_SPECS = (("x", 0), ("x", 1), ("x", 2), ("y", 0), ("y", 1), ("z", 0))
_SUBLANE = 8
_LANE = 128


def model_forward(x, y, z):
    inputs = {"x": x, "y": y, "z": z}

    # --- pack: each cumprod becomes an (N_i, M_i) column stripe of one slab ---
    views = []  # (2D view with scan axis first, moved shape)
    for name, axis in _SPECS:
        a = jnp.moveaxis(inputs[name], axis, 0)
        n_i = a.shape[0]
        m_i = int(np.prod(a.shape[1:])) if a.ndim > 1 else 1
        views.append((a.reshape(n_i, m_i), a.shape))

    n_max = max(v.shape[0] for v, _ in views)
    n_slab = max(_SUBLANE, ((n_max + _SUBLANE - 1) // _SUBLANE) * _SUBLANE)
    m_total = sum(v.shape[1] for v, _ in views)
    m_slab = max(_LANE, ((m_total + _LANE - 1) // _LANE) * _LANE)

    cols, offsets, off = [], [], 0
    for v, _ in views:
        n_i, m_i = v.shape
        cols.append(jnp.pad(v, ((0, n_slab - n_i), (0, 0)), constant_values=1))
        offsets.append(off)
        off += m_i
    slab = jnp.concatenate(cols, axis=1)
    slab = jnp.pad(slab, ((0, 0), (0, m_slab - m_total)), constant_values=1)

    # --- single fused Pallas scan over the lane-dense slab ---
    out_slab = _scan_slab(slab)

    # --- unpack: slice each stripe, restore original shape / axis order ---
    results = []
    for (v, moved_shape), off, (_, axis) in zip(views, offsets, _SPECS):
        n_i, m_i = v.shape
        o = out_slab[:n_i, off:off + m_i].reshape(moved_shape)
        results.append(jnp.moveaxis(o, 0, axis))
    return tuple(results)


if __name__ == "__main__":
    key = jax.random.PRNGKey(0)
    kx, ky, kz = jax.random.split(key, 3)

    # Small shapes consistent with the module's forward (3D, 2D, 1D inputs).
    x = jax.random.uniform(kx, (2, 4, 16), dtype=jnp.float32) + 0.5
    y = jax.random.uniform(ky, (4, 8), dtype=jnp.float32) + 0.5
    z = jax.random.uniform(kz, (16,), dtype=jnp.float32) + 0.5

    fwd = jax.jit(model_forward)
    outs = jax.block_until_ready(fwd(x, y, z))

    # Reference check against jnp.cumprod (matches torch.cumprod semantics).
    refs = (
        jnp.cumprod(x, axis=0),
        jnp.cumprod(x, axis=1),
        jnp.cumprod(x, axis=2),
        jnp.cumprod(y, axis=0),
        jnp.cumprod(y, axis=1),
        jnp.cumprod(z, axis=0),
    )
    for o, r in zip(outs, refs):
        assert o.shape == r.shape and o.dtype == r.dtype
        np.testing.assert_allclose(np.asarray(o), np.asarray(r), rtol=1e-5, atol=1e-5)

    print("KERNEL_OK")
</pallas_src>

<mosaic_0001>
module attributes {stable_mosaic.version = 11 : i64} {
  func.func @_fused_cumprod_kernel(%arg0: i32, %arg1: memref<16x128xf32, #tpu.memory_space<vmem>>, %arg2: memref<16x128xf32, #tpu.memory_space<vmem>>) attributes {dimension_semantics = [#tpu.dimension_semantics<arbitrary>], iteration_bounds = array<i64: 1>, scalar_prefetch = 0 : i64, scratch_operands = 0 : i64, tpu.core_type = #tpu.core_type<tc>, window_params = [{pipeline_mode = #tpu.pipeline_mode<synchronous>, transform_indices = @transform_0, window_bounds = array<i64: 16, 128>}, {pipeline_mode = #tpu.pipeline_mode<synchronous>, transform_indices = @transform_1, window_bounds = array<i64: 16, 128>}]} {
    %c0 = arith.constant 0 : index
    %c0_0 = arith.constant 0 : index
    %0 = vector.load %arg1[%c0, %c0_0] : memref<16x128xf32, #tpu.memory_space<vmem>>, vector<16x128xf32>
    %1 = tpu.iota {dimensions = array<i32: 0>} : vector<16x128xi32>
    %c1_i32 = arith.constant 1 : i32
    %2 = tpu.dynamic_rotate %0 by %c1_i32 dim 0 : vector<16x128xf32>, i32 -> vector<16x128xf32>
    %c1_i32_1 = arith.constant 1 : i32
    %3 = vector.broadcast %c1_i32_1 : i32 to vector<16x128xi32>
    %4 = arith.cmpi sge, %1, %3 : vector<16x128xi32>
    %cst = arith.constant 1.000000e+00 : f32
    %5 = vector.broadcast %cst : f32 to vector<16x128xf32>
    %6 = arith.select %4, %2, %5 : vector<16x128xi1>, vector<16x128xf32>
    %7 = arith.mulf %0, %6 : vector<16x128xf32>
    %c2_i32 = arith.constant 2 : i32
    %8 = tpu.dynamic_rotate %7 by %c2_i32 dim 0 : vector<16x128xf32>, i32 -> vector<16x128xf32>
    %c2_i32_2 = arith.constant 2 : i32
    %9 = vector.broadcast %c2_i32_2 : i32 to vector<16x128xi32>
    %10 = arith.cmpi sge, %1, %9 : vector<16x128xi32>
    %cst_3 = arith.constant 1.000000e+00 : f32
    %11 = vector.broadcast %cst_3 : f32 to vector<16x128xf32>
    %12 = arith.select %10, %8, %11 : vector<16x128xi1>, vector<16x128xf32>
    %13 = arith.mulf %7, %12 : vector<16x128xf32>
    %c4_i32 = arith.constant 4 : i32
    %14 = tpu.dynamic_rotate %13 by %c4_i32 dim 0 : vector<16x128xf32>, i32 -> vector<16x128xf32>
    %c4_i32_4 = arith.constant 4 : i32
    %15 = vector.broadcast %c4_i32_4 : i32 to vector<16x128xi32>
    %16 = arith.cmpi sge, %1, %15 : vector<16x128xi32>
    %cst_5 = arith.constant 1.000000e+00 : f32
    %17 = vector.broadcast %cst_5 : f32 to vector<16x128xf32>
    %18 = arith.select %16, %14, %17 : vector<16x128xi1>, vector<16x128xf32>
    %19 = arith.mulf %13, %18 : vector<16x128xf32>
    %c8_i32 = arith.constant 8 : i32
    %20 = tpu.dynamic_rotate %19 by %c8_i32 dim 0 : vector<16x128xf32>, i32 -> vector<16x128xf32>
    %c8_i32_6 = arith.constant 8 : i32
    %21 = vector.broadcast %c8_i32_6 : i32 to vector<16x128xi32>
    %22 = arith.cmpi sge, %1, %21 : vector<16x128xi32>
    %cst_7 = arith.constant 1.000000e+00 : f32
    %23 = vector.broadcast %cst_7 : f32 to vector<16x128xf32>
    %24 = arith.select %22, %20, %23 : vector<16x128xi1>, vector<16x128xf32>
    %25 = arith.mulf %19, %24 : vector<16x128xf32>
    %c0_8 = arith.constant 0 : index
    %c0_9 = arith.constant 0 : index
    %26 = vector.load %arg2[%c0_8, %c0_9] : memref<16x128xf32, #tpu.memory_space<vmem>>, vector<16x128xf32>
    tpu.vector_store %arg2[%c0_8, %c0_9], %25 {strides = array<i32>} : memref<16x128xf32, #tpu.memory_space<vmem>>, vector<16x128xf32>,
    return
  }
  func.func @transform_0(%arg0: i32) -> (i32, i32) {
    %c0_i32 = arith.constant 0 : i32
    %c0_i32_0 = arith.constant 0 : i32
    %c0_i32_1 = arith.constant 0 : i32
    return %c0_i32, %c0_i32_0 : i32, i32
  }
  func.func @transform_1(%arg0: i32) -> (i32, i32) {
    %c0_i32 = arith.constant 0 : i32
    %c0_i32_0 = arith.constant 0 : i32
    %c0_i32_1 = arith.constant 0 : i32
    return %c0_i32, %c0_i32_0 : i32, i32
  }
}

</mosaic_0001>

<llo_original>
// kernel: model_forward.1
$region0: #{model_forward.1}
  #allocation0 [shape = 'u32[]', space=smem, size = 0x4, offset = 0x4, fixed_abs, tag = 'smem constant byte address 0x4 - core index']
  #allocation1 [shape = 'u32[72,128]{1,0:T(1,128)}', space=vmem, size = 0x9000, scoped, tag = 'internal scratch']
  %s0 = inlined_call_operand.vmem [shape: f32[16,128], index: 0, kind: input, shape index: {}]
  %s1 = inlined_call_operand.vmem [shape: f32[16,128], index: 1, kind: output, shape index: {}]
  %s2 = sld [smem:[#allocation0]]
  $region14: #{model_forward.1} parent=0
    _
  %s4 = ssub.s32 1, %s2
  %s5 = scalar_select 0, %s4, %s2
  // Predicated region
  $region2: #{model_forward.1} parent=0 // pred_check
    _
  $region3: #{model_forward.1} parent=0 // pred_check_branch
    %7 = sbr.rel (0) target = $region5
  $region4: #{model_forward.1} parent=0 // pred_region
    _
  $region5: #{model_forward.1} parent=0 // pred_fallthru
    _
  %v8 = vld [vmem:[%s0] sm:$0xff]
  %v9 = vld [vmem:[%s0 + $0x8] sm:$0xff]
  %v10 = vlaneseq
  %v11 = vshrl.u32 %v10, 7
  %v12 = vadd.s32 %v11, 8
  %v13 = vrot.slane %v8, 7
  %v14 = vrot.slane %v9, 7
  %vm15 = vcmp.lt.s32.totalorder %v11, 1
  %v16 = vsel %vm15, %v13, %v14
  %v17 = vsel %vm15, %v14, %v13
  %vm18 = vcmp.ge.s32.totalorder %v11, 1
  %vm19 = vcmp.ge.s32.totalorder %v12, 1
  %v20 = vsel %vm18, %v17, 1.0
  %v21 = vsel %vm19, %v16, 1.0
  %v22 = vmul.f32 %v8, %v20
  %v23 = vmul.f32 %v9, %v21
  %v24 = vrot.slane %v22, 6
  %v25 = vrot.slane %v23, 6
  %vm26 = vcmp.lt.s32.totalorder %v11, 2
  %v27 = vsel %vm26, %v24, %v25
  %v28 = vsel %vm26, %v25, %v24
  %vm29 = vcmp.ge.s32.totalorder %v11, 2
  %vm30 = vcmp.ge.s32.totalorder %v12, 2
  %v31 = vsel %vm29, %v28, 1.0
  %v32 = vsel %vm30, %v27, 1.0
  %v33 = vmul.f32 %v22, %v31
  %v34 = vmul.f32 %v23, %v32
  %v35 = vrot.slane %v33, 4
  %v36 = vrot.slane %v34, 4
  %vm37 = vcmp.lt.s32.totalorder %v11, 4
  %v38 = vsel %vm37, %v35, %v36
  %v39 = vsel %vm37, %v36, %v35
  %vm40 = vcmp.ge.s32.totalorder %v11, 4
  %vm41 = vcmp.ge.s32.totalorder %v12, 4
  %v42 = vsel %vm40, %v39, 1.0
  %v43 = vsel %vm41, %v38, 1.0
  %v44 = vmul.f32 %v33, %v42
  %v45 = vmul.f32 %v34, %v43
  %vm46 = vcmp.ge.s32.totalorder %v11, 8
  %vm47 = vcmp.ge.s32.totalorder %v12, 8
  %v48 = vsel %vm46, %v45, 1.0
  %v49 = vsel %vm47, %v44, 1.0
  %v50 = vmul.f32 %v44, %v48
  %v51 = vmul.f32 %v45, %v49
  %52 = vst [vmem:[%s1] sm:$0xff] %v50
  %53 = vst [vmem:[%s1 + $0x8] sm:$0xff] %v51
  // Predicated region
  $region6: #{model_forward.1} parent=0 // pred_check
    _
  $region7: #{model_forward.1} parent=0 // pred_check_branch
    %55 = sbr.rel (0) target = $region9
  $region8: #{model_forward.1} parent=0 // pred_region
    _
  $region9: #{model_forward.1} parent=0 // pred_fallthru
    _
  // Predicated region
  $region10: #{model_forward.1} parent=0 // pred_check
    _
  $region11: #{model_forward.1} parent=0 // pred_check_branch
    %57 = sbr.rel (0) target = $region13
  $region12: #{model_forward.1} parent=0 // pred_region
    _
  $region13: #{model_forward.1} parent=0 // pred_fallthru
    _

</llo_original>
